<compile_context>
chip_gen: v6e
topology: v6e:2x2x1
jax: 0.10.0
libtpu: 0.0.40
codegen_flags: <defaults>
</compile_context>

<pallas_src>
import functools

import jax
import jax.numpy as jnp
from jax.experimental import pallas as pl
from jax.experimental.pallas import tpu as pltpu


def _device_kind():
    try:
        return jax.devices()[0].device_kind.lower()
    except Exception:
        return ""


def _pad_rows(rows, itemsize):
    """Sublane rows actually occupied in VMEM (packed dtypes pad to 16/32)."""
    g = 8 * max(1, 4 // max(1, itemsize))
    return ((rows + g - 1) // g) * g


def _srl_kernel(x_ref, y_ref, inter_ref, gt_ref, *, s_valid, ts, tiles_per_split):
    """Accumulate per-(b, c) sum(x*y) and per-(b, yc) sum(y) over lane tiles."""
    k = pl.program_id(1)

    @pl.when(k == 0)
    def _init():
        inter_ref[...] = jnp.zeros_like(inter_ref)
        gt_ref[...] = jnp.zeros_like(gt_ref)

    # Global lane-tile index. The second core-split may own tiles past the end
    # of the array (their block index is clamped in the index_map); those are
    # fully masked below and contribute zero.
    g = pl.program_id(0) * tiles_per_split + k
    valid = s_valid - g * ts            # <= 0 on pad tiles, < ts on the tail tile

    def _f32(v):
        if jnp.issubdtype(v.dtype, jnp.floating):
            return v.astype(jnp.float32)
        return v.astype(jnp.int32).astype(jnp.float32)   # bool / uint8 / int8 masks

    def _reduce_minor(v):
        # Reduce lane axis first, then the sublane fold axis (keepdims so the
        # result matches the narrow accumulator block layout).
        for ax in range(v.ndim - 1, 1, -1):
            v = jnp.sum(v, axis=ax, keepdims=True)
        return v

    def _accum(xt, yt):
        inter_ref[...] += _reduce_minor(xt * yt)     # yt broadcasts over channels
        gt_ref[...] += _reduce_minor(yt)

    # TODO(synk): optional (rows, 128) f32 scratch accumulator to keep the XLU
    # reduce and narrow store out of the per-step loop for narrow-dtype streams.

    # Fast path: interior (full) tiles need no masking.
    @pl.when(valid >= ts)
    def _full():
        _accum(_f32(x_ref[...]), _f32(y_ref[...]))

    # Tail / pad tiles: overhang lanes hold garbage, mask BOTH x and y.
    @pl.when(valid < ts)
    def _tail():
        xm = jax.lax.broadcasted_iota(jnp.int32, x_ref.shape, len(x_ref.shape) - 1) < valid
        ym = jax.lax.broadcasted_iota(jnp.int32, y_ref.shape, len(y_ref.shape) - 1) < valid
        _accum(jnp.where(xm, _f32(x_ref[...]), 0.0),
               jnp.where(ym, _f32(y_ref[...]), 0.0))


def soft_skeleton_recall_loss(x, y, apply_nonlin=None, smooth=1.0):
    """JAX/Pallas equivalent of SoftSkeletonRecallLoss.forward(x, y)."""
    shp_x, shp_y = x.shape, y.shape
    if apply_nonlin is not None:
        # TODO(synk): fuse the channel nonlinearity into the kernel (or at least
        # emit it in bf16) so x is not written + re-read from HBM.
        x = apply_nonlin(x)
    if len(shp_x) != len(shp_y):
        y = jnp.reshape(y, (shp_y[0], 1, *shp_y[1:]))

    b, c = x.shape[0], x.shape[1]
    if y.shape != x.shape:
        if (len(y.shape) == len(x.shape) and y.shape[0] == b
                and y.shape[1] == 1 and y.shape[2:] == x.shape[2:]):
            pass          # stream the (b, 1, ...) gt directly; no broadcast copy
        else:
            y = jnp.broadcast_to(y, x.shape)   # rare general-broadcast fallback
    yc = y.shape[1]

    smooth = float(smooth)
    S = 1
    for d in x.shape[2:]:
        S *= d
    if S == 0:  # degenerate empty spatial extent
        val = smooth / max(smooth, 1e-8) if smooth != 0.0 else 0.0
        return -jnp.mean(jnp.full((b, c), val, jnp.float32))

    x_item = jnp.dtype(x.dtype).itemsize
    y_item = jnp.dtype(y.dtype).itemsize

    # Optional sublane fold of the spatial axis: keeps vregs dense even when
    # c / yc (the natural sublane rows) are tiny. Free row-major reshape.
    r = 1
    for cand in (32, 16, 8):
        if S % cand == 0 and S // cand >= 128:
            r = cand
            break
    use_fold = r > 1
    s_lanes = S // r

    if use_fold:
        xr = jnp.reshape(x, (b, c, r, s_lanes))
        yr = jnp.reshape(y, (b, yc, r, s_lanes))
        x_vmem_rows = b * c * _pad_rows(r, x_item)
        y_vmem_rows = b * yc * _pad_rows(r, y_item)
        x_fresh_rows, y_fresh_rows = b * c * r, b * yc * r
    else:
        xr = jnp.reshape(x, (b, c, S))
        yr = jnp.reshape(y, (b, yc, S))
        x_vmem_rows = b * _pad_rows(c, x_item)
        y_vmem_rows = b * _pad_rows(yc, y_item)
        x_fresh_rows, y_fresh_rows = b * c, b * yc

    fresh_bytes_per_lane = x_fresh_rows * x_item + y_fresh_rows * y_item
    vmem_bytes_per_lane = x_vmem_rows * x_item + y_vmem_rows * y_item

    # Per-generation step sizing: v7x has ~2.3x the HBM BW but only 64 MiB
    # VMEM; v5e/v6e have 128 MiB VMEM, so buffers can be larger there.
    kind = _device_kind()
    is_v7 = "v7" in kind
    single_tc = any(t in kind for t in ("v5e", "v5 lite", "v5lite", "v6"))
    target_step_bytes = (8 << 20) if is_v7 else (4 << 20)
    buf_budget_bytes = (24 << 20) if is_v7 else (40 << 20)

    ts = target_step_bytes // max(1, fresh_bytes_per_lane)
    ts = min(ts, buf_budget_bytes // max(1, 2 * vmem_bytes_per_lane))
    ts = max(128, (ts // 128) * 128)
    # TODO(synk): for enormous b*c (block rows alone overflowing VMEM), tile
    # the batch axis onto the grid as well.
    if s_lanes <= ts:
        ts = s_lanes                   # single full-extent lane block (allowed)
        num_tiles = 1
    else:
        num_tiles = pl.cdiv(s_lanes, ts)

    # Split lane tiles across TensorCores (2 on v7x / megacore parts); the
    # split only adds overhead on single-core v5e/v6e, so skip it there.
    max_split = 1 if single_tc else 2
    n_split = max_split if num_tiles >= 2 else 1
    tiles_per_split = pl.cdiv(num_tiles, n_split)
    last_block = num_tiles - 1

    nd = 4 if use_fold else 3          # block ndim for x / y
    n_minor = nd - 2

    def in_idx(h, k):
        return (0,) * (nd - 1) + (jnp.minimum(h * tiles_per_split + k, last_block),)

    def out_idx(h, k):
        return (h,) + (0,) * nd

    x_block = (b, c, r, ts) if use_fold else (b, c, ts)
    y_block = (b, yc, r, ts) if use_fold else (b, yc, ts)
    inter_block = (None, b, c) + (1,) * n_minor
    gt_block = (None, b, yc) + (1,) * n_minor
    inter_shape = (n_split, b, c) + (1,) * n_minor
    gt_shape = (n_split, b, yc) + (1,) * n_minor

    # Honest VMEM limit: double-buffered input streams + room for per-tile f32
    # temporaries + fixed headroom (well under 64 MiB on v7x, generous on
    # v5e/v6e's 128 MiB).
    footprint = 2 * ts * vmem_bytes_per_lane
    x_block_f32 = 4 * ts * x_fresh_rows
    vmem_limit = int(min(max(footprint + x_block_f32 + (8 << 20), 32 << 20),
                         (48 << 20) if is_v7 else (100 << 20)))

    kernel = functools.partial(_srl_kernel, s_valid=s_lanes, ts=ts,
                               tiles_per_split=tiles_per_split)

    inter_parts, gt_parts = pl.pallas_call(
        kernel,
        out_shape=(
            jax.ShapeDtypeStruct(inter_shape, jnp.float32),
            jax.ShapeDtypeStruct(gt_shape, jnp.float32),
        ),
        grid_spec=pltpu.PrefetchScalarGridSpec(
            num_scalar_prefetch=0,
            grid=(n_split, tiles_per_split),
            in_specs=[
                pl.BlockSpec(x_block, in_idx),
                pl.BlockSpec(y_block, in_idx),
            ],
            out_specs=(
                pl.BlockSpec(inter_block, out_idx),
                pl.BlockSpec(gt_block, out_idx),
            ),
        ),
        compiler_params=pltpu.CompilerParams(
            dimension_semantics=("parallel", "arbitrary"),
            vmem_limit_bytes=vmem_limit,
        ),
    )(xr, yr)

    # Tiny epilogue: combine the core-splits, then rec / mean. sum_gt may be
    # (b, 1) and broadcasts over channels exactly like the torch code.
    inter = jnp.sum(inter_parts, axis=0).reshape(b, c)
    sum_gt = jnp.sum(gt_parts, axis=0).reshape(b, yc)
    # torch.clip(v, 1e-8) with no max == maximum(v, 1e-8)
    rec = (inter + smooth) / jnp.maximum(sum_gt + smooth, 1e-8)
    return -jnp.mean(rec)                            # mean over (b, c)


def _reference(x, y, smooth=1.0):
    if x.ndim != y.ndim:
        y = jnp.reshape(y, (y.shape[0], 1, *y.shape[1:]))
    axes = tuple(range(2, x.ndim))
    xf = x.astype(jnp.float32)
    yf = y.astype(jnp.float32)
    sum_gt = jnp.sum(yf, axis=axes)
    inter = jnp.sum(xf * yf, axis=axes)
    rec = (inter + smooth) / jnp.maximum(sum_gt + smooth, 1e-8)
    return -jnp.mean(rec)


if __name__ == "__main__":
    key = jax.random.PRNGKey(0)
    kx, ky = jax.random.split(key)

    b, c, h, w = 2, 4, 16, 16
    # Predicted (soft) segmentation probabilities, NCHW.
    x = jax.nn.softmax(jax.random.normal(kx, (b, c, h, w), dtype=jnp.float32), axis=1)
    labels = jax.random.randint(ky, (b, h, w), 0, c)

    # Path 1: one-hot gt with the same shape as x (f32).
    y_onehot = jax.nn.one_hot(labels, c, axis=1, dtype=jnp.float32)
    loss1 = jax.block_until_ready(soft_skeleton_recall_loss(x, y_onehot, smooth=1.0))
    ref1 = _reference(x, y_onehot, smooth=1.0)
    assert jnp.allclose(loss1, ref1, atol=1e-5, rtol=1e-5), (loss1, ref1)

    # Path 2: skeleton mask with a missing channel dim (b, h, w) in a narrow
    # uint8 dtype; streamed without materializing the channel broadcast.
    y_mask = (labels == 1).astype(jnp.uint8)
    loss2 = jax.block_until_ready(soft_skeleton_recall_loss(x, y_mask, smooth=1.0))
    ref2 = _reference(x, y_mask, smooth=1.0)
    assert jnp.allclose(loss2, ref2, atol=1e-5, rtol=1e-5), (loss2, ref2)

    print("KERNEL_OK")
</pallas_src>

<mosaic_0001>
module attributes {stable_mosaic.version = 11 : i64} {
  func.func @_srl_kernel(%arg0: i32, %arg1: i32, %arg2: memref<2x4x256xf32, #tpu.memory_space<vmem>>, %arg3: memref<2x4x256xf32, #tpu.memory_space<vmem>>, %arg4: memref<1x2x4x1xf32, #tpu.memory_space<vmem>>, %arg5: memref<1x2x4x1xf32, #tpu.memory_space<vmem>>) attributes {dimension_semantics = [#tpu.dimension_semantics<parallel>, #tpu.dimension_semantics<arbitrary>], iteration_bounds = array<i64: 1, 1>, scalar_prefetch = 0 : i64, scratch_operands = 0 : i64, tpu.core_type = #tpu.core_type<tc>, window_params = [{transform_indices = @transform_0, window_bounds = array<i64: 2, 4, 256>}, {transform_indices = @transform_1, window_bounds = array<i64: 2, 4, 256>}, {transform_indices = @transform_2, window_bounds = array<i64: 1, 2, 4, 1>}, {transform_indices = @transform_3, window_bounds = array<i64: 1, 2, 4, 1>}]} {
    %c0_i32 = arith.constant 0 : i32
    %0 = arith.cmpi eq, %arg1, %c0_i32 : i32
    %1 = arith.extui %0 : i1 to i32
    %c0_i32_0 = arith.constant 0 : i32
    %2 = arith.cmpi ne, %1, %c0_i32_0 : i32
    scf.if %2 {
      %cst = arith.constant 0.000000e+00 : f32
      %13 = vector.broadcast %cst : f32 to vector<2x4x1xf32>
      %c0 = arith.constant 0 : index
      %c0_6 = arith.constant 0 : index
      %c0_7 = arith.constant 0 : index
      %c0_8 = arith.constant 0 : index
      %14 = vector.load %arg4[%c0, %c0_6, %c0_7, %c0_8] : memref<1x2x4x1xf32, #tpu.memory_space<vmem>>, vector<1x2x4x1xf32>
      %15 = vector.shape_cast %14 : vector<1x2x4x1xf32> to vector<2x4x1xf32>
      %16 = vector.shape_cast %13 : vector<2x4x1xf32> to vector<1x2x4x1xf32>
      tpu.vector_store %arg4[%c0, %c0_6, %c0_7, %c0_8], %16 {strides = array<i32>} : memref<1x2x4x1xf32, #tpu.memory_space<vmem>>, vector<1x2x4x1xf32>,
      %cst_9 = arith.constant 0.000000e+00 : f32
      %17 = vector.broadcast %cst_9 : f32 to vector<2x4x1xf32>
      %c0_10 = arith.constant 0 : index
      %c0_11 = arith.constant 0 : index
      %c0_12 = arith.constant 0 : index
      %c0_13 = arith.constant 0 : index
      %18 = vector.load %arg5[%c0_10, %c0_11, %c0_12, %c0_13] : memref<1x2x4x1xf32, #tpu.memory_space<vmem>>, vector<1x2x4x1xf32>
      %19 = vector.shape_cast %18 : vector<1x2x4x1xf32> to vector<2x4x1xf32>
      %20 = vector.shape_cast %17 : vector<2x4x1xf32> to vector<1x2x4x1xf32>
      tpu.vector_store %arg5[%c0_10, %c0_11, %c0_12, %c0_13], %20 {strides = array<i32>} : memref<1x2x4x1xf32, #tpu.memory_space<vmem>>, vector<1x2x4x1xf32>,
    } else {
    }
    %c1_i32 = arith.constant 1 : i32
    %3 = arith.muli %arg0, %c1_i32 : i32
    %4 = arith.addi %3, %arg1 : i32
    %c256_i32 = arith.constant 256 : i32
    %5 = arith.muli %4, %c256_i32 : i32
    %c256_i32_1 = arith.constant 256 : i32
    %6 = arith.subi %c256_i32_1, %5 : i32
    %c256_i32_2 = arith.constant 256 : i32
    %7 = arith.cmpi sge, %6, %c256_i32_2 : i32
    %8 = arith.extui %7 : i1 to i32
    %c0_i32_3 = arith.constant 0 : i32
    %9 = arith.cmpi ne, %8, %c0_i32_3 : i32
    scf.if %9 {
      %c0 = arith.constant 0 : index
      %c0_6 = arith.constant 0 : index
      %c0_7 = arith.constant 0 : index
      %13 = vector.load %arg2[%c0, %c0_6, %c0_7] : memref<2x4x256xf32, #tpu.memory_space<vmem>>, vector<2x4x256xf32>
      %c0_8 = arith.constant 0 : index
      %c0_9 = arith.constant 0 : index
      %c0_10 = arith.constant 0 : index
      %14 = vector.load %arg3[%c0_8, %c0_9, %c0_10] : memref<2x4x256xf32, #tpu.memory_space<vmem>>, vector<2x4x256xf32>
      %c0_11 = arith.constant 0 : index
      %c0_12 = arith.constant 0 : index
      %c0_13 = arith.constant 0 : index
      %c0_14 = arith.constant 0 : index
      %15 = vector.load %arg4[%c0_11, %c0_12, %c0_13, %c0_14] : memref<1x2x4x1xf32, #tpu.memory_space<vmem>>, vector<1x2x4x1xf32>
      %16 = vector.shape_cast %15 : vector<1x2x4x1xf32> to vector<2x4x1xf32>
      %17 = arith.mulf %13, %14 : vector<2x4x256xf32>
      %cst = arith.constant dense<0.000000e+00> : vector<2x4xf32>
      %18 = vector.multi_reduction <add>, %17, %cst [2] : vector<2x4x256xf32> to vector<2x4xf32>
      %19 = vector.shape_cast %18 : vector<2x4xf32> to vector<2x4x1xf32>
      %20 = arith.addf %16, %19 : vector<2x4x1xf32>
      %c0_15 = arith.constant 0 : index
      %c0_16 = arith.constant 0 : index
      %c0_17 = arith.constant 0 : index
      %c0_18 = arith.constant 0 : index
      %21 = vector.load %arg4[%c0_15, %c0_16, %c0_17, %c0_18] : memref<1x2x4x1xf32, #tpu.memory_space<vmem>>, vector<1x2x4x1xf32>
      %22 = vector.shape_cast %21 : vector<1x2x4x1xf32> to vector<2x4x1xf32>
      %23 = vector.shape_cast %20 : vector<2x4x1xf32> to vector<1x2x4x1xf32>
      tpu.vector_store %arg4[%c0_15, %c0_16, %c0_17, %c0_18], %23 {strides = array<i32>} : memref<1x2x4x1xf32, #tpu.memory_space<vmem>>, vector<1x2x4x1xf32>,
      %c0_19 = arith.constant 0 : index
      %c0_20 = arith.constant 0 : index
      %c0_21 = arith.constant 0 : index
      %c0_22 = arith.constant 0 : index
      %24 = vector.load %arg5[%c0_19, %c0_20, %c0_21, %c0_22] : memref<1x2x4x1xf32, #tpu.memory_space<vmem>>, vector<1x2x4x1xf32>
      %25 = vector.shape_cast %24 : vector<1x2x4x1xf32> to vector<2x4x1xf32>
      %cst_23 = arith.constant dense<0.000000e+00> : vector<2x4xf32>
      %26 = vector.multi_reduction <add>, %14, %cst_23 [2] : vector<2x4x256xf32> to vector<2x4xf32>
      %27 = vector.shape_cast %26 : vector<2x4xf32> to vector<2x4x1xf32>
      %28 = arith.addf %25, %27 : vector<2x4x1xf32>
      %c0_24 = arith.constant 0 : index
      %c0_25 = arith.constant 0 : index
      %c0_26 = arith.constant 0 : index
      %c0_27 = arith.constant 0 : index
      %29 = vector.load %arg5[%c0_24, %c0_25, %c0_26, %c0_27] : memref<1x2x4x1xf32, #tpu.memory_space<vmem>>, vector<1x2x4x1xf32>
      %30 = vector.shape_cast %29 : vector<1x2x4x1xf32> to vector<2x4x1xf32>
      %31 = vector.shape_cast %28 : vector<2x4x1xf32> to vector<1x2x4x1xf32>
      tpu.vector_store %arg5[%c0_24, %c0_25, %c0_26, %c0_27], %31 {strides = array<i32>} : memref<1x2x4x1xf32, #tpu.memory_space<vmem>>, vector<1x2x4x1xf32>,
    } else {
    }
    %c256_i32_4 = arith.constant 256 : i32
    %10 = arith.cmpi slt, %6, %c256_i32_4 : i32
    %11 = arith.extui %10 : i1 to i32
    %c0_i32_5 = arith.constant 0 : i32
    %12 = arith.cmpi ne, %11, %c0_i32_5 : i32
    scf.if %12 {
      %13 = tpu.iota {dimensions = array<i32: 2>} : vector<2x4x256xi32>
      %14 = vector.broadcast %6 : i32 to vector<2x4x256xi32>
      %15 = arith.cmpi slt, %13, %14 : vector<2x4x256xi32>
      %16 = tpu.iota {dimensions = array<i32: 2>} : vector<2x4x256xi32>
      %17 = vector.broadcast %6 : i32 to vector<2x4x256xi32>
      %18 = arith.cmpi slt, %16, %17 : vector<2x4x256xi32>
      %c0 = arith.constant 0 : index
      %c0_6 = arith.constant 0 : index
      %c0_7 = arith.constant 0 : index
      %19 = vector.load %arg2[%c0, %c0_6, %c0_7] : memref<2x4x256xf32, #tpu.memory_space<vmem>>, vector<2x4x256xf32>
      %cst = arith.constant 0.000000e+00 : f32
      %20 = vector.broadcast %cst : f32 to vector<2x4x256xf32>
      %21 = arith.select %15, %19, %20 : vector<2x4x256xi1>, vector<2x4x256xf32>
      %c0_8 = arith.constant 0 : index
      %c0_9 = arith.constant 0 : index
      %c0_10 = arith.constant 0 : index
      %22 = vector.load %arg3[%c0_8, %c0_9, %c0_10] : memref<2x4x256xf32, #tpu.memory_space<vmem>>, vector<2x4x256xf32>
      %cst_11 = arith.constant 0.000000e+00 : f32
      %23 = vector.broadcast %cst_11 : f32 to vector<2x4x256xf32>
      %24 = arith.select %18, %22, %23 : vector<2x4x256xi1>, vector<2x4x256xf32>
      %c0_12 = arith.constant 0 : index
      %c0_13 = arith.constant 0 : index
      %c0_14 = arith.constant 0 : index
      %c0_15 = arith.constant 0 : index
      %25 = vector.load %arg4[%c0_12, %c0_13, %c0_14, %c0_15] : memref<1x2x4x1xf32, #tpu.memory_space<vmem>>, vector<1x2x4x1xf32>
      %26 = vector.shape_cast %25 : vector<1x2x4x1xf32> to vector<2x4x1xf32>
      %27 = arith.mulf %21, %24 : vector<2x4x256xf32>
      %cst_16 = arith.constant dense<0.000000e+00> : vector<2x4xf32>
      %28 = vector.multi_reduction <add>, %27, %cst_16 [2] : vector<2x4x256xf32> to vector<2x4xf32>
      %29 = vector.shape_cast %28 : vector<2x4xf32> to vector<2x4x1xf32>
      %30 = arith.addf %26, %29 : vector<2x4x1xf32>
      %c0_17 = arith.constant 0 : index
      %c0_18 = arith.constant 0 : index
      %c0_19 = arith.constant 0 : index
      %c0_20 = arith.constant 0 : index
      %31 = vector.load %arg4[%c0_17, %c0_18, %c0_19, %c0_20] : memref<1x2x4x1xf32, #tpu.memory_space<vmem>>, vector<1x2x4x1xf32>
      %32 = vector.shape_cast %31 : vector<1x2x4x1xf32> to vector<2x4x1xf32>
      %33 = vector.shape_cast %30 : vector<2x4x1xf32> to vector<1x2x4x1xf32>
      tpu.vector_store %arg4[%c0_17, %c0_18, %c0_19, %c0_20], %33 {strides = array<i32>} : memref<1x2x4x1xf32, #tpu.memory_space<vmem>>, vector<1x2x4x1xf32>,
      %c0_21 = arith.constant 0 : index
      %c0_22 = arith.constant 0 : index
      %c0_23 = arith.constant 0 : index
      %c0_24 = arith.constant 0 : index
      %34 = vector.load %arg5[%c0_21, %c0_22, %c0_23, %c0_24] : memref<1x2x4x1xf32, #tpu.memory_space<vmem>>, vector<1x2x4x1xf32>
      %35 = vector.shape_cast %34 : vector<1x2x4x1xf32> to vector<2x4x1xf32>
      %cst_25 = arith.constant dense<0.000000e+00> : vector<2x4xf32>
      %36 = vector.multi_reduction <add>, %24, %cst_25 [2] : vector<2x4x256xf32> to vector<2x4xf32>
      %37 = vector.shape_cast %36 : vector<2x4xf32> to vector<2x4x1xf32>
      %38 = arith.addf %35, %37 : vector<2x4x1xf32>
      %c0_26 = arith.constant 0 : index
      %c0_27 = arith.constant 0 : index
      %c0_28 = arith.constant 0 : index
      %c0_29 = arith.constant 0 : index
      %39 = vector.load %arg5[%c0_26, %c0_27, %c0_28, %c0_29] : memref<1x2x4x1xf32, #tpu.memory_space<vmem>>, vector<1x2x4x1xf32>
      %40 = vector.shape_cast %39 : vector<1x2x4x1xf32> to vector<2x4x1xf32>
      %41 = vector.shape_cast %38 : vector<2x4x1xf32> to vector<1x2x4x1xf32>
      tpu.vector_store %arg5[%c0_26, %c0_27, %c0_28, %c0_29], %41 {strides = array<i32>} : memref<1x2x4x1xf32, #tpu.memory_space<vmem>>, vector<1x2x4x1xf32>,
    } else {
    }
    return
  }
  func.func @transform_0(%arg0: i32, %arg1: i32) -> (i32, i32, i32) {
    %c1_i32 = arith.constant 1 : i32
    %0 = arith.muli %arg0, %c1_i32 : i32
    %1 = arith.addi %0, %arg1 : i32
    %c0_i32 = arith.constant 0 : i32
    %2 = arith.minsi %1, %c0_i32 : i32
    %c0_i32_0 = arith.constant 0 : i32
    %c0_i32_1 = arith.constant 0 : i32
    %c0_i32_2 = arith.constant 0 : i32
    return %c0_i32_0, %c0_i32_1, %2 : i32, i32, i32
  }
  func.func @transform_1(%arg0: i32, %arg1: i32) -> (i32, i32, i32) {
    %c1_i32 = arith.constant 1 : i32
    %0 = arith.muli %arg0, %c1_i32 : i32
    %1 = arith.addi %0, %arg1 : i32
    %c0_i32 = arith.constant 0 : i32
    %2 = arith.minsi %1, %c0_i32 : i32
    %c0_i32_0 = arith.constant 0 : i32
    %c0_i32_1 = arith.constant 0 : i32
    %c0_i32_2 = arith.constant 0 : i32
    return %c0_i32_0, %c0_i32_1, %2 : i32, i32, i32
  }
  func.func @transform_2(%arg0: i32, %arg1: i32) -> (i32, i32, i32, i32) {
    %c0_i32 = arith.constant 0 : i32
    %c0_i32_0 = arith.constant 0 : i32
    %c0_i32_1 = arith.constant 0 : i32
    %c0_i32_2 = arith.constant 0 : i32
    return %arg0, %c0_i32, %c0_i32_0, %c0_i32_1 : i32, i32, i32, i32
  }
  func.func @transform_3(%arg0: i32, %arg1: i32) -> (i32, i32, i32, i32) {
    %c0_i32 = arith.constant 0 : i32
    %c0_i32_0 = arith.constant 0 : i32
    %c0_i32_1 = arith.constant 0 : i32
    %c0_i32_2 = arith.constant 0 : i32
    return %arg0, %c0_i32, %c0_i32_0, %c0_i32_1 : i32, i32, i32, i32
  }
}

</mosaic_0001>

<llo_original>
// kernel: tpu_custom_call.1
$region0: #{tpu_custom_call.1}
  #allocation0 [shape = 'u32[]', space=smem, size = 0x4, offset = 0x4, fixed_abs, tag = 'smem constant byte address 0x4 - core index']
  #allocation1 [shape = 'u32[144,128]{1,0:T(1,128)}', space=vmem, size = 0x12000, scoped, tag = 'internal scratch']
  %s0 = inlined_call_operand.hbm [shape: f32[2,4,256], index: 0, kind: input, shape index: {}]
  %s1 = inlined_call_operand.hbm [shape: f32[2,4,256], index: 1, kind: input, shape index: {}]
  %s2 = inlined_call_operand.vmem [shape: f32[1,2,4,1], index: 2, kind: output, shape index: {0}]
  %s3 = inlined_call_operand.vmem [shape: f32[1,2,4,1], index: 3, kind: output, shape index: {1}]
  %4 = xla_tuple %s2, %s3
  %s5 = sld [smem:[#allocation0]]
  $region46: #{tpu_custom_call.1} parent=0
    _
  %s7 = ssub.s32 1, %s5
  %s8 = scalar_select 0, %s7, %s5
  $region1: #{tpu_custom_call.1} parent=0
    #allocation2 [shape = 'u8[8192]{0}', space=vmem, size = 0x2000, scoped, tag = 'input window, operand 0, single buffered']
    #allocation3 [shape = 's32[1]{0}', space=sflag, size = 0x4, scoped, tag = 'scoped memory for tpu_custom_call.1']
    #allocation4 [shape = 'u8[8192]{0}', space=vmem, size = 0x2000, scoped, tag = 'input window, operand 1, single buffered']
    #allocation5 [shape = 's32[1]{0}', space=sflag, size = 0x4, scoped, tag = 'scoped memory for tpu_custom_call.1']
    %9 = vsyncpa [#allocation3], 0
    %10 = vsyncpa [#allocation5], 0
    // Predicated region
    $region2: #{tpu_custom_call.1} parent=1 // pred_check
      _
    $region3: #{tpu_custom_call.1} parent=1 // pred_check_branch
      %12 = sbr.rel (0) target = $region5
    $region4: #{tpu_custom_call.1} parent=1 // pred_region
      %s13 = sadd.s32 0, 0
      %p14 = scmp.lt.s32.totalorder %s13, 0
      %s15 = scalar_select %p14, %s13, 0
      %s16 = smul.u32 2, %s15
      %s18 = ssub.s32 256, 256
      %19 = vsyncadd [#allocation3], %s18
      %s20 = smul.addr %s16, 64
      %s21 = scalar_lea.hbm %s0, %s20
      %s22 = sshll.u32 [#allocation2], 4
      %s23 = int_to_ptr.vmem [resolvable:$true] %s22
      %28 = dma.hbm_to_vmem [thread:$0]  %s21, 256, %s23, [#allocation3], 128, 128, 8
    $region5: #{tpu_custom_call.1} parent=1 // pred_fallthru
      _
    // Predicated region
    $region6: #{tpu_custom_call.1} parent=1 // pred_check
      _
    $region7: #{tpu_custom_call.1} parent=1 // pred_check_branch
      %30 = sbr.rel (0) target = $region9
    $region8: #{tpu_custom_call.1} parent=1 // pred_region
      %s31 = sadd.s32 0, 0
      %p32 = scmp.lt.s32.totalorder %s31, 0
      %s33 = scalar_select %p32, %s31, 0
      %s34 = smul.u32 2, %s33
      %s36 = ssub.s32 256, 256
      %37 = vsyncadd [#allocation5], %s36
      %s38 = smul.addr %s34, 64
      %s39 = scalar_lea.hbm %s1, %s38
      %s40 = sshll.u32 [#allocation4], 4
      %s41 = int_to_ptr.vmem [resolvable:$true] %s40
      %46 = dma.hbm_to_vmem [thread:$0]  %s39, 256, %s41, [#allocation5], 128, 128, 8
    $region9: #{tpu_custom_call.1} parent=1 // pred_fallthru
      _
    // Predicated region
    $region10: #{tpu_custom_call.1} parent=1 // pred_check
      _
    $region11: #{tpu_custom_call.1} parent=1 // pred_check_branch
      %48 = sbr.rel (0) target = $region13
    $region12: #{tpu_custom_call.1} parent=1 // pred_region
      %49 = dma.done [#allocation3], 256
    $region13: #{tpu_custom_call.1} parent=1 // pred_fallthru
      _
    // Predicated region
    $region14: #{tpu_custom_call.1} parent=1 // pred_check
      _
    $region15: #{tpu_custom_call.1} parent=1 // pred_check_branch
      %51 = sbr.rel (0) target = $region17
    $region16: #{tpu_custom_call.1} parent=1 // pred_region
      %52 = dma.done [#allocation5], 256
    $region17: #{tpu_custom_call.1} parent=1 // pred_fallthru
      _
    %s53 = sadd.s32 0, 0
    %p54 = scmp.lt.s32.totalorder %s53, 0
    %s55 = scalar_select %p54, %s53, 0
    %s56 = smul.u32 2, %s55
    %s57 = sadd.s32 0, 0
    %p58 = scmp.lt.s32.totalorder %s57, 0
    %s59 = scalar_select %p58, %s57, 0
    %s60 = smul.u32 2, %s59
    %p61 = scmp.eq.s32.totalorder 0, 0
    // Predicated region
    $region18: #{tpu_custom_call.1} parent=1 // pred_check
      %p62 = pneg %p61
    $region19: #{tpu_custom_call.1} parent=1 // pred_check_branch
      %64 = sbr.rel (%p62) target = $region21
    $region20: #{tpu_custom_call.1} parent=1 // pred_region
      %vm65 = vcmask 3072
      %66 = vst.msk [vmem:[%s2] sm:$0xf] %vm65, 0.0
      %67 = vst.msk [vmem:[%s2 + $0x4] sm:$0xf] %vm65, 0.0
      %68 = vst.msk [vmem:[%s3] sm:$0xf] %vm65, 0.0
      %69 = vst.msk [vmem:[%s3 + $0x4] sm:$0xf] %vm65, 0.0
    $region21: #{tpu_custom_call.1} parent=1 // pred_fallthru
      _
    %s70 = sadd.s32 0, 0
    %s71 = smul.u32 %s70, 256
    %s72 = ssub.s32 256, %s71
    %p73 = scmp.ge.s32.totalorder %s72, 256
    // Predicated region
    $region22: #{tpu_custom_call.1} parent=1 // pred_check
      %p74 = pneg %p73
    $region23: #{tpu_custom_call.1} parent=1 // pred_check_branch
      %76 = sbr.rel (%p74) target = $region25
    $region24: #{tpu_custom_call.1} parent=1 // pred_region
      %v77 = vld [vmem:[#allocation2] sm:$0xff]
      %v78 = vld [vmem:[#allocation2 + $0x8] sm:$0xff]
      %v79 = vld [vmem:[#allocation4] sm:$0xff]
      %v80 = vld [vmem:[#allocation4 + $0x8] sm:$0xff]
      %v81 = vld [vmem:[%s2] sm:$0xf]
      %v82 = vld [vmem:[%s2 + $0x4] sm:$0xf]
      %v83 = vmul.f32 %v77, %v79
      %v84 = vmul.f32 %v78, %v80
      %v87 = vcombine.high %v83, %v83
      %v88 = vcombine.high %v84, %v84
      %vm91 = vcmask 1043456
      %v92 = vsel %vm91, %v83, 0.0
      %v93 = vsel %vm91, %v87, 0.0
      %v94 = vadd.f32 %v92, %v93
      %95 = vadd.xlane.f32.xlu0 %v94
      %v96 = vpop.xlane.xlu0 %95
      %v97 = vsel %vm91, %v84, 0.0
      %v98 = vsel %vm91, %v88, 0.0
      %v99 = vadd.f32 %v97, %v98
      %100 = vadd.xlane.f32.xlu0 %v99
      %v101 = vpop.xlane.xlu0 %100
      %v102 = vadd.f32 %v81, %v96
      %v103 = vadd.f32 %v82, %v101
      %vm104 = vcmask 3072
      %105 = vst.msk [vmem:[%s2] sm:$0xf] %vm104, %v102
      %106 = vst.msk [vmem:[%s2 + $0x4] sm:$0xf] %vm104, %v103
      %v107 = vld [vmem:[%s3] sm:$0xf]
      %v108 = vld [vmem:[%s3 + $0x4] sm:$0xf]
      %v111 = vcombine.high %v79, %v79
      %v112 = vcombine.high %v80, %v80
      %v115 = vsel %vm91, %v79, 0.0
      %v116 = vsel %vm91, %v111, 0.0
      %v117 = vadd.f32 %v115, %v116
      %118 = vadd.xlane.f32.xlu0 %v117
      %v119 = vpop.xlane.xlu0 %118
      %v120 = vsel %vm91, %v80, 0.0
      %v121 = vsel %vm91, %v112, 0.0
      %v122 = vadd.f32 %v120, %v121
      %123 = vadd.xlane.f32.xlu0 %v122
      %v124 = vpop.xlane.xlu0 %123
      %v125 = vadd.f32 %v107, %v119
      %v126 = vadd.f32 %v108, %v124
      %127 = vst.msk [vmem:[%s3] sm:$0xf] %vm104, %v125
      %128 = vst.msk [vmem:[%s3 + $0x4] sm:$0xf] %vm104, %v126
    $region25: #{tpu_custom_call.1} parent=1 // pred_fallthru
      _
    %p129 = scmp.lt.s32.totalorder %s72, 256
    // Predicated region
    $region26: #{tpu_custom_call.1} parent=1 // pred_check
      %p130 = pneg %p129
    $region27: #{tpu_custom_call.1} parent=1 // pred_check_branch
      %132 = sbr.rel (%p130) target = $region29
    $region28: #{tpu_custom_call.1} parent=1 // pred_region
      %v133 = vlaneseq
      %v134 = vand.u32 %v133, 127
      %v135 = vadd.s32 %v134, 128
      %v136 = vstv %s72
      %vm137 = vcmp.lt.s32.totalorder %v134, %v136
      %vm138 = vcmp.lt.s32.totalorder %v135, %v136
      %v139 = vld [vmem:[#allocation2] sm:$0xff]
      %v140 = vld [vmem:[#allocation2 + $0x8] sm:$0xff]
      %v143 = vcombine.high %v139, %v139
      %v144 = vcombine.high %v140, %v140
      %v147 = vsel %vm137, %v139, 0.0
      %v148 = vsel %vm138, %v143, 0.0
      %v149 = vsel %vm137, %v140, 0.0
      %v150 = vsel %vm138, %v144, 0.0
      %v151 = vld [vmem:[#allocation4] sm:$0xff]
      %v152 = vld [vmem:[#allocation4 + $0x8] sm:$0xff]
      %v155 = vcombine.high %v151, %v151
      %v156 = vcombine.high %v152, %v152
      %v159 = vsel %vm137, %v151, 0.0
      %v160 = vsel %vm138, %v155, 0.0
      %v161 = vsel %vm137, %v152, 0.0
      %v162 = vsel %vm138, %v156, 0.0
      %v163 = vld [vmem:[%s2] sm:$0xf]
      %v164 = vld [vmem:[%s2 + $0x4] sm:$0xf]
      %v165 = vmul.f32 %v147, %v159
      %v166 = vmul.f32 %v148, %v160
      %v167 = vmul.f32 %v149, %v161
      %v168 = vmul.f32 %v150, %v162
      %vm169 = vcmask 1043456
      %v170 = vsel %vm169, %v165, 0.0
      %v171 = vsel %vm169, %v166, 0.0
      %v172 = vadd.f32 %v170, %v171
      %173 = vadd.xlane.f32.xlu0 %v172
      %v174 = vpop.xlane.xlu0 %173
      %v175 = vsel %vm169, %v167, 0.0
      %v176 = vsel %vm169, %v168, 0.0
      %v177 = vadd.f32 %v175, %v176
      %178 = vadd.xlane.f32.xlu0 %v177
      %v179 = vpop.xlane.xlu0 %178
      %v180 = vadd.f32 %v163, %v174
      %v181 = vadd.f32 %v164, %v179
      %vm182 = vcmask 3072
      %183 = vst.msk [vmem:[%s2] sm:$0xf] %vm182, %v180
      %184 = vst.msk [vmem:[%s2 + $0x4] sm:$0xf] %vm182, %v181
      %v185 = vld [vmem:[%s3] sm:$0xf]
      %v186 = vld [vmem:[%s3 + $0x4] sm:$0xf]
      %v187 = vsel %vm169, %v159, 0.0
      %v188 = vsel %vm169, %v160, 0.0
      %v189 = vadd.f32 %v187, %v188
      %190 = vadd.xlane.f32.xlu0 %v189
      %v191 = vpop.xlane.xlu0 %190
      %v192 = vsel %vm169, %v161, 0.0
      %v193 = vsel %vm169, %v162, 0.0
      %v194 = vadd.f32 %v192, %v193
      %195 = vadd.xlane.f32.xlu0 %v194
      %v196 = vpop.xlane.xlu0 %195
      %v197 = vadd.f32 %v185, %v191
      %v198 = vadd.f32 %v186, %v196
      %199 = vst.msk [vmem:[%s3] sm:$0xf] %vm182, %v197
      %200 = vst.msk [vmem:[%s3 + $0x4] sm:$0xf] %vm182, %v198
    $region29: #{tpu_custom_call.1} parent=1 // pred_fallthru
      _
    // Predicated region
    $region30: #{tpu_custom_call.1} parent=1 // pred_check
      _
    $region31: #{tpu_custom_call.1} parent=1 // pred_check_branch
      %202 = sbr.rel (0) target = $region33
    $region32: #{tpu_custom_call.1} parent=1 // pred_region
      _
    $region33: #{tpu_custom_call.1} parent=1 // pred_fallthru
      _
    // Predicated region
    $region34: #{tpu_custom_call.1} parent=1 // pred_check
      _
    $region35: #{tpu_custom_call.1} parent=1 // pred_check_branch
      %204 = sbr.rel (0) target = $region37
    $region36: #{tpu_custom_call.1} parent=1 // pred_region
      _
    $region37: #{tpu_custom_call.1} parent=1 // pred_fallthru
      _
    // Predicated region
    $region38: #{tpu_custom_call.1} parent=1 // pred_check
      _
    $region39: #{tpu_custom_call.1} parent=1 // pred_check_branch
      %206 = sbr.rel (0) target = $region41
    $region40: #{tpu_custom_call.1} parent=1 // pred_region
      _
    $region41: #{tpu_custom_call.1} parent=1 // pred_fallthru
      _
    // Predicated region
    $region42: #{tpu_custom_call.1} parent=1 // pred_check
      _
    $region43: #{tpu_custom_call.1} parent=1 // pred_check_branch
      %208 = sbr.rel (0) target = $region45
    $region44: #{tpu_custom_call.1} parent=1 // pred_region
      _
    $region45: #{tpu_custom_call.1} parent=1 // pred_fallthru
      _
    %209 = vsyncpa [#allocation3], 1
    %210 = vsyncpa [#allocation5], 1

</llo_original>
